<compile_context>
chip_gen: v7x
topology: tpu7x:2x2x1
jax: 0.10.0
libtpu: 0.0.40
codegen_flags: <defaults>
</compile_context>

<pallas_src>
import jax
import jax.numpy as jnp
from jax.experimental import pallas as pl
from jax.experimental.pallas import tpu as pltpu

_MIB = 1 << 20


def _round_up(a, b):
    return ((a + b - 1) // b) * b


def _vmem_budget_bytes():
    """Per-generation VMEM cap: ~48 MiB on 64 MiB parts (v7x), ~96 MiB on 128 MiB parts."""
    try:
        phys = int(pltpu.get_tpu_info().vmem_capacity_bytes)
    except Exception:
        phys = 64 * _MIB  # conservative fallback
    return 48 * _MIB if phys <= 64 * _MIB else 96 * _MIB


def _spec(shape, index_map, buffers=None):
    """BlockSpec, optionally with N-deep pipelining; falls back to the default spec."""
    if buffers is not None and hasattr(pl, "Buffered"):
        try:
            return pl.BlockSpec(shape, index_map, pipeline_mode=pl.Buffered(buffers))
        except TypeError:
            pass
    return pl.BlockSpec(shape, index_map)


def _ln_relu(y_f32, a2_f32, b2_f32, eps=1e-6):
    """torch-LayerNorm (unbiased std) + ReLU on an f32 (rows, D_out) tile."""
    d_out = y_f32.shape[-1]
    mean = jnp.mean(y_f32, axis=-1, keepdims=True)
    c = y_f32 - mean
    var_unbiased = jnp.sum(c * c, axis=-1, keepdims=True) * (1.0 / (d_out - 1))
    std = jnp.sqrt(var_unbiased)
    # One reciprocal per row on the EUP instead of a per-lane divide of the whole tile.
    # (~1 ulp difference vs. a true divide; within the stated tolerances.)
    inv = pl.reciprocal(std + eps, approx=False)
    return jnp.maximum(a2_f32 * (c * inv) + b2_f32, 0.0)


def _single_k_kernel(x_ref, w_ref, b_ref, a2_ref, b2_ref, o_ref):
    """Weight-resident path: one K step, no accumulator round trip.

    x_ref : (tm, D_in)     row tile
    w_ref : (D_in, D_out)  whole weight (constant block index -> fetched once)
    """
    y = jnp.dot(x_ref[...], w_ref[...], preferred_element_type=jnp.float32)
    y = y + b_ref[...].astype(jnp.float32)
    out = _ln_relu(y, a2_ref[...].astype(jnp.float32), b2_ref[...].astype(jnp.float32))
    o_ref[...] = out.astype(o_ref.dtype)


def _streamed_k_kernel(x_ref, w_ref, b_ref, a2_ref, b2_ref, o_ref, acc_ref):
    """K-streamed path: grid=(row_tiles, k_tiles), k innermost ("arbitrary").

    acc_ref is an f32 (tm, D_out) scratch accumulator resident across k.
    """
    k = pl.program_id(1)

    @pl.when(k == 0)
    def _():
        # Seed the accumulator with the bias -> no bias add in the epilogue.
        acc_ref[...] = jnp.broadcast_to(b_ref[...].astype(jnp.float32), acc_ref.shape)

    acc_ref[...] += jnp.dot(x_ref[...], w_ref[...], preferred_element_type=jnp.float32)

    @pl.when(k == pl.num_programs(1) - 1)
    def _():
        out = _ln_relu(acc_ref[...],
                       a2_ref[...].astype(jnp.float32),
                       b2_ref[...].astype(jnp.float32))
        o_ref[...] = out.astype(o_ref.dtype)


def sublayer_connection(x, w_sub, b_sub, a2, b2, *,
                        tm=None, tk_max=None,
                        compute_dtype=None,
                        force_k_streaming=False):
    """x: [B, S, D_in]; returns ReLU(LayerNorm(x @ w_sub + b_sub)) of shape [B, S, D_out].

    compute_dtype: optionally cast x / w to (e.g.) bf16 for the native MXU path;
    accumulation stays f32 regardless.
    """
    if compute_dtype is not None:
        x = x.astype(compute_dtype)
        w_sub = w_sub.astype(compute_dtype)

    B, S, D_in = x.shape
    d_in_w, D_out = w_sub.shape
    assert d_in_w == D_in
    assert D_out > 1, "unbiased std (torch .std) divides by D_out - 1"

    N = B * S
    itemsize = jnp.dtype(x.dtype).itemsize
    w_itemsize = jnp.dtype(w_sub.dtype).itemsize
    out_itemsize = itemsize
    row_align = 8 * max(1, 4 // itemsize)        # 8 (f32) / 16 (bf16) / 32 (int8)

    # dtype-aware tile defaults: bf16 halves the bytes, so double the tile.
    if tm is None:
        tm = 512 if itemsize <= 2 else 256
    if tk_max is None:
        tk_max = 1024 if itemsize <= 2 else 512

    # Clamp the row tile to the problem and keep >= 2 row tiles so v7x's second
    # TensorCore has work (no effect for large N; v5e/v6e are single-TC).
    tm = min(tm, _round_up(N, row_align))
    if N > row_align:
        tm = min(tm, _round_up((N + 1) // 2, row_align))
    tm = max(row_align, _round_up(tm, row_align))

    vmem_cap = _vmem_budget_bytes()
    headroom = 4 * _MIB                          # compiler internal scratch / spill slack
    budget = vmem_cap - headroom

    def footprint(tm_, tk_, single_k):
        x_b = 3 * tm_ * tk_ * itemsize                           # up to 3-deep buffering
        w_b = (2 if single_k else 3) * tk_ * D_out * w_itemsize  # resident weight still 2x
        o_b = 2 * tm_ * D_out * out_itemsize
        a_b = 0 if single_k else tm_ * D_out * 4                 # f32 accumulator
        p_b = 6 * D_out * 4                                      # bias + LN params
        return x_b + w_b + o_b + a_b + p_b

    # --- choose between full-weight residency (single K step) and K streaming ---
    single_k = (not force_k_streaming) and footprint(tm, D_in, True) <= budget
    if (not single_k) and (not force_k_streaming) and tm > 128:
        # 64 MiB-VMEM case: residency may still pay off at a halved (>=128) row tile.
        tm_try = max(128, _round_up(tm // 2, row_align))
        if footprint(tm_try, D_in, True) <= budget:
            single_k, tm = True, tm_try

    x2d = x.reshape(N, D_in)
    w2d = w_sub
    b_sub2d = b_sub.reshape(1, D_out).astype(jnp.float32)
    a2_2d = a2.reshape(1, D_out).astype(jnp.float32)
    b2_2d = b2.reshape(1, D_out).astype(jnp.float32)

    if single_k:
        tk = D_in
        grid = (_round_up(N, tm) // tm,)  # == pl.cdiv(N, tm); boundary block masked
        dim_sem = ("parallel",)
        kernel = _single_k_kernel
        scratch_shapes = []
        out_specs = pl.BlockSpec((tm, D_out), lambda i: (i, 0))

        def build_in_specs(buffers):
            return [
                _spec((tm, D_in), lambda i: (i, 0), buffers=buffers),    # x rows
                pl.BlockSpec((D_in, D_out), lambda i: (0, 0)),           # weight: resident
                pl.BlockSpec((1, D_out), lambda i: (0, 0)),              # bias
                pl.BlockSpec((1, D_out), lambda i: (0, 0)),              # LN a_2
                pl.BlockSpec((1, D_out), lambda i: (0, 0)),              # LN b_2
            ]
    else:
        # K streaming: prefer a tk (multiple of 128) that divides D_in -> no padding.
        tk = None
        upper = min(tk_max, (D_in // 128) * 128)
        for cand in range(upper, 127, -128):
            if D_in % cand == 0:
                tk = cand
                break
        if tk is None:
            tk = min(tk_max, _round_up(max(D_in, 1), 128))
        K_pad = _round_up(D_in, tk)

        # Shrink the row tile if the streamed footprint still doesn't fit.
        while footprint(tm, tk, False) > budget and tm > row_align:
            tm = max(row_align, _round_up(tm // 2, row_align))

        if K_pad != D_in:  # rare fallback: zero-pad K only (zero rows don't affect x @ W)
            x2d = jnp.pad(x2d, ((0, 0), (0, K_pad - D_in)))
            w2d = jnp.pad(w2d, ((0, K_pad - D_in), (0, 0)))

        grid = (_round_up(N, tm) // tm, K_pad // tk)
        dim_sem = ("parallel", "arbitrary")
        kernel = _streamed_k_kernel
        scratch_shapes = [pltpu.VMEM((tm, D_out), jnp.float32)]
        out_specs = pl.BlockSpec((tm, D_out), lambda i, k: (i, 0))

        def build_in_specs(buffers):
            return [
                _spec((tm, tk), lambda i, k: (i, k), buffers=buffers),    # x, K streamed
                _spec((tk, D_out), lambda i, k: (k, 0), buffers=buffers), # w, K streamed
                pl.BlockSpec((1, D_out), lambda i, k: (0, 0)),            # bias
                pl.BlockSpec((1, D_out), lambda i, k: (0, 0)),            # LN a_2
                pl.BlockSpec((1, D_out), lambda i, k: (0, 0)),            # LN b_2
            ]

    vmem_limit = int(min(vmem_cap, max(footprint(tm, tk, single_k) + headroom, 32 * _MIB)))

    def run(buffers):
        return pl.pallas_call(
            kernel,
            out_shape=jax.ShapeDtypeStruct((N, D_out), x.dtype),
            grid_spec=pltpu.PrefetchScalarGridSpec(
                num_scalar_prefetch=0,
                grid=grid,
                in_specs=build_in_specs(buffers),
                out_specs=out_specs,
                scratch_shapes=scratch_shapes,
            ),
            compiler_params=pltpu.CompilerParams(
                dimension_semantics=dim_sem,
                vmem_limit_bytes=vmem_limit,
            ),
        )(x2d, w2d, b_sub2d, a2_2d, b2_2d)

    try:
        out = run(3)        # 3-deep input buffering hides the LN-epilogue bubble
    except Exception:
        out = run(None)     # fall back to default double-buffering if unsupported

    return out.reshape(B, S, D_out)


def reference(x, w_sub, b_sub, a2, b2):
    """Pure-JAX reference mirroring the PyTorch forward."""
    eps = 1e-6
    y = jnp.einsum("bsd,de->bse", x, w_sub) + b_sub
    mean = jnp.mean(y, axis=-1, keepdims=True)
    c = y - mean
    std = jnp.sqrt(jnp.sum(c * c, axis=-1, keepdims=True) / (y.shape[-1] - 1))
    return jnp.maximum(a2 * c / (std + eps) + b2, 0.0)


if __name__ == "__main__":
    key = jax.random.PRNGKey(0)

    # NOTE: the reference forward computes `res = self.residual(x)` but never uses it,
    # so no residual add is performed here either.
    # TODO(synk): training-mode dropout mask not implemented (identity at inference).

    # --- 1. small demo shape consistent with the module ---
    B, S, D_in, D_out = 2, 8, 32, 32
    kx, kw, kb = jax.random.split(key, 3)
    x = jax.random.normal(kx, (B, S, D_in), dtype=jnp.float32)
    w_sub = jax.random.normal(kw, (D_in, D_out), dtype=jnp.float32) * 0.1
    b_sub = jax.random.normal(kb, (D_out,), dtype=jnp.float32) * 0.1
    a2 = jnp.ones((D_out,), dtype=jnp.float32)   # LayerNorm a_2 init
    b2 = jnp.zeros((D_out,), dtype=jnp.float32)  # LayerNorm b_2 init

    out = jax.block_until_ready(sublayer_connection(x, w_sub, b_sub, a2, b2))
    ref = reference(x, w_sub, b_sub, a2, b2)
    assert out.shape == (B, S, D_out)
    assert jnp.allclose(out, ref, atol=1e-5, rtol=1e-5), float(jnp.max(jnp.abs(out - ref)))

    # --- 2. partial boundary row block (N % tm != 0) + resident-weight path ---
    B2, S2, D_in2, D_out2 = 3, 37, 640, 256
    k1, k2, k3, k4, k5 = jax.random.split(jax.random.PRNGKey(1), 5)
    x_b = jax.random.normal(k1, (B2, S2, D_in2), dtype=jnp.float32)
    w_b = jax.random.normal(k2, (D_in2, D_out2), dtype=jnp.float32) * 0.05
    b_b = jax.random.normal(k3, (D_out2,), dtype=jnp.float32) * 0.05
    a2_b = 1.0 + 0.1 * jax.random.normal(k4, (D_out2,), dtype=jnp.float32)
    b2_b = 0.1 * jax.random.normal(k5, (D_out2,), dtype=jnp.float32)

    out_b = jax.block_until_ready(sublayer_connection(x_b, w_b, b_b, a2_b, b2_b))
    ref_b = reference(x_b, w_b, b_b, a2_b, b2_b)
    assert out_b.shape == (B2, S2, D_out2)
    assert jnp.allclose(out_b, ref_b, atol=1e-4, rtol=1e-4), \
        float(jnp.max(jnp.abs(out_b - ref_b)))

    # --- 3. same shapes, forced K streaming (exercises the accumulator kernel) ---
    out_c = jax.block_until_ready(
        sublayer_connection(x_b, w_b, b_b, a2_b, b2_b, force_k_streaming=True))
    assert jnp.allclose(out_c, ref_b, atol=1e-4, rtol=1e-4), \
        float(jnp.max(jnp.abs(out_c - ref_b)))

    # --- 4. K-padding fallback (tk does not divide D_in) ---
    B3, S3, D_in3, D_out3 = 2, 13, 200, 128
    k6, k7, k8 = jax.random.split(jax.random.PRNGKey(2), 3)
    x_d = jax.random.normal(k6, (B3, S3, D_in3), dtype=jnp.float32)
    w_d = jax.random.normal(k7, (D_in3, D_out3), dtype=jnp.float32) * 0.1
    b_d = jax.random.normal(k8, (D_out3,), dtype=jnp.float32) * 0.1
    a2_d = jnp.ones((D_out3,), dtype=jnp.float32)
    b2_d = jnp.zeros((D_out3,), dtype=jnp.float32)
    out_d = jax.block_until_ready(
        sublayer_connection(x_d, w_d, b_d, a2_d, b2_d, force_k_streaming=True))
    ref_d = reference(x_d, w_d, b_d, a2_d, b2_d)
    assert jnp.allclose(out_d, ref_d, atol=1e-4, rtol=1e-4), \
        float(jnp.max(jnp.abs(out_d - ref_d)))

    print("KERNEL_OK")
</pallas_src>

<mosaic_0001>
module attributes {stable_mosaic.version = 11 : i64} {
  func.func @_single_k_kernel(%arg0: i32, %arg1: memref<8x32xf32, #tpu.memory_space<vmem>>, %arg2: memref<32x32xf32, #tpu.memory_space<vmem>>, %arg3: memref<1x32xf32, #tpu.memory_space<vmem>>, %arg4: memref<1x32xf32, #tpu.memory_space<vmem>>, %arg5: memref<1x32xf32, #tpu.memory_space<vmem>>, %arg6: memref<8x32xf32, #tpu.memory_space<vmem>>) attributes {dimension_semantics = [#tpu.dimension_semantics<parallel>], iteration_bounds = array<i64: 2>, scalar_prefetch = 0 : i64, scratch_operands = 0 : i64, tpu.core_type = #tpu.core_type<tc>, window_params = [{transform_indices = @transform_0, window_bounds = array<i64: 8, 32>}, {pipeline_mode = #tpu.pipeline_mode<synchronous>, transform_indices = @transform_1, window_bounds = array<i64: 32, 32>}, {pipeline_mode = #tpu.pipeline_mode<synchronous>, transform_indices = @transform_2, window_bounds = array<i64: 1, 32>}, {pipeline_mode = #tpu.pipeline_mode<synchronous>, transform_indices = @transform_3, window_bounds = array<i64: 1, 32>}, {pipeline_mode = #tpu.pipeline_mode<synchronous>, transform_indices = @transform_4, window_bounds = array<i64: 1, 32>}, {transform_indices = @transform_5, window_bounds = array<i64: 8, 32>}]} {
    %c0 = arith.constant 0 : index
    %c0_0 = arith.constant 0 : index
    %0 = vector.load %arg1[%c0, %c0_0] : memref<8x32xf32, #tpu.memory_space<vmem>>, vector<8x32xf32>
    %c0_1 = arith.constant 0 : index
    %c0_2 = arith.constant 0 : index
    %1 = vector.load %arg2[%c0_1, %c0_2] : memref<32x32xf32, #tpu.memory_space<vmem>>, vector<32x32xf32>
    %cst = arith.constant dense<0.000000e+00> : vector<8x32xf32>
    %2 = tpu.matmul %0, %1, %cst {dimension_numbers = #tpu.dot_dimension_numbers<[1], [0], [0], [1], [0, 0, 1, 1], [], []>} : vector<8x32xf32>, vector<32x32xf32>, vector<8x32xf32> -> vector<8x32xf32>
    %c0_3 = arith.constant 0 : index
    %c0_4 = arith.constant 0 : index
    %3 = vector.load %arg3[%c0_3, %c0_4] : memref<1x32xf32, #tpu.memory_space<vmem>>, vector<1x32xf32>
    %4 = vector.broadcast %3 : vector<1x32xf32> to vector<8x32xf32>
    %5 = arith.addf %2, %4 : vector<8x32xf32>
    %c0_5 = arith.constant 0 : index
    %c0_6 = arith.constant 0 : index
    %6 = vector.load %arg4[%c0_5, %c0_6] : memref<1x32xf32, #tpu.memory_space<vmem>>, vector<1x32xf32>
    %c0_7 = arith.constant 0 : index
    %c0_8 = arith.constant 0 : index
    %7 = vector.load %arg5[%c0_7, %c0_8] : memref<1x32xf32, #tpu.memory_space<vmem>>, vector<1x32xf32>
    %cst_9 = arith.constant dense<0.000000e+00> : vector<8xf32>
    %8 = vector.multi_reduction <add>, %5, %cst_9 [1] : vector<8x32xf32> to vector<8xf32>
    %9 = vector.shape_cast %8 : vector<8xf32> to vector<8x1xf32>
    %cst_10 = arith.constant 3.200000e+01 : f32
    %10 = vector.broadcast %cst_10 : f32 to vector<8x1xf32>
    %11 = arith.divf %9, %10 : vector<8x1xf32>
    %12 = vector.broadcast %11 : vector<8x1xf32> to vector<8x32xf32>
    %13 = arith.subf %5, %12 : vector<8x32xf32>
    %14 = arith.mulf %13, %13 : vector<8x32xf32>
    %cst_11 = arith.constant dense<0.000000e+00> : vector<8xf32>
    %15 = vector.multi_reduction <add>, %14, %cst_11 [1] : vector<8x32xf32> to vector<8xf32>
    %16 = vector.shape_cast %15 : vector<8xf32> to vector<8x1xf32>
    %cst_12 = arith.constant 0.0322580636 : f32
    %17 = vector.broadcast %cst_12 : f32 to vector<8x1xf32>
    %18 = arith.mulf %16, %17 : vector<8x1xf32>
    %19 = math.sqrt %18 : vector<8x1xf32>
    %cst_13 = arith.constant 9.99999997E-7 : f32
    %20 = vector.broadcast %cst_13 : f32 to vector<8x1xf32>
    %21 = arith.addf %19, %20 : vector<8x1xf32>
    %22 = tpu.reciprocal %21 : vector<8x1xf32> -> vector<8x1xf32>
    %23 = vector.broadcast %22 : vector<8x1xf32> to vector<8x32xf32>
    %24 = arith.mulf %13, %23 : vector<8x32xf32>
    %25 = vector.broadcast %6 : vector<1x32xf32> to vector<8x32xf32>
    %26 = arith.mulf %25, %24 : vector<8x32xf32>
    %27 = vector.broadcast %7 : vector<1x32xf32> to vector<8x32xf32>
    %28 = arith.addf %26, %27 : vector<8x32xf32>
    %cst_14 = arith.constant 0.000000e+00 : f32
    %29 = vector.broadcast %cst_14 : f32 to vector<8x32xf32>
    %30 = arith.maximumf %28, %29 : vector<8x32xf32>
    %c0_15 = arith.constant 0 : index
    %c0_16 = arith.constant 0 : index
    %31 = vector.load %arg6[%c0_15, %c0_16] : memref<8x32xf32, #tpu.memory_space<vmem>>, vector<8x32xf32>
    tpu.vector_store %arg6[%c0_15, %c0_16], %30 {strides = array<i32>} : memref<8x32xf32, #tpu.memory_space<vmem>>, vector<8x32xf32>,
    return
  }
  func.func @transform_0(%arg0: i32) -> (i32, i32) {
    %c0_i32 = arith.constant 0 : i32
    %c0_i32_0 = arith.constant 0 : i32
    return %arg0, %c0_i32 : i32, i32
  }
  func.func @transform_1(%arg0: i32) -> (i32, i32) {
    %c0_i32 = arith.constant 0 : i32
    %c0_i32_0 = arith.constant 0 : i32
    %c0_i32_1 = arith.constant 0 : i32
    return %c0_i32, %c0_i32_0 : i32, i32
  }
  func.func @transform_2(%arg0: i32) -> (i32, i32) {
    %c0_i32 = arith.constant 0 : i32
    %c0_i32_0 = arith.constant 0 : i32
    %c0_i32_1 = arith.constant 0 : i32
    return %c0_i32, %c0_i32_0 : i32, i32
  }
  func.func @transform_3(%arg0: i32) -> (i32, i32) {
    %c0_i32 = arith.constant 0 : i32
    %c0_i32_0 = arith.constant 0 : i32
    %c0_i32_1 = arith.constant 0 : i32
    return %c0_i32, %c0_i32_0 : i32, i32
  }
  func.func @transform_4(%arg0: i32) -> (i32, i32) {
    %c0_i32 = arith.constant 0 : i32
    %c0_i32_0 = arith.constant 0 : i32
    %c0_i32_1 = arith.constant 0 : i32
    return %c0_i32, %c0_i32_0 : i32, i32
  }
  func.func @transform_5(%arg0: i32) -> (i32, i32) {
    %c0_i32 = arith.constant 0 : i32
    %c0_i32_0 = arith.constant 0 : i32
    return %arg0, %c0_i32 : i32, i32
  }
}

</mosaic_0001>

<llo_original>
// kernel: tpu_custom_call.1
$region0: #{tpu_custom_call.1}
  #allocation0 [shape = 'u32[]', space=smem, size = 0x4, offset = 0x4, fixed_abs, tag = 'smem constant byte address 0x4 - core index']
  #allocation1 [shape = 'u32[144,128]{1,0:T(1,128)}', space=vmem, size = 0x12000, scoped, tag = 'internal scratch']
  %s0 = inlined_call_operand.hbm [shape: f32[16,32], index: 0, kind: input, shape index: {}]
  %s1 = inlined_call_operand.hbm [shape: f32[32,32], index: 1, kind: input, shape index: {}]
  %s2 = inlined_call_operand.vmem [shape: f32[1,32], index: 2, kind: input, shape index: {}]
  %s3 = inlined_call_operand.vmem [shape: f32[1,32], index: 3, kind: input, shape index: {}]
  %s4 = inlined_call_operand.vmem [shape: f32[1,32], index: 4, kind: input, shape index: {}]
  %s5 = inlined_call_operand.hbm [shape: f32[16,32], index: 5, kind: output, shape index: {}]
  %s6 = sld [smem:[#allocation0]]
  $region61: #{tpu_custom_call.1} parent=0
    _
  %s8 = ssub.s32 1, %s6
  %s9 = scalar_select 0, %s8, %s6
  $region1: #{tpu_custom_call.1} parent=0
    #allocation2 [shape = 'u8[8192]{0}', space=vmem, size = 0x2000, scoped, tag = 'input window, operand 0']
    #allocation3 [shape = 's32[2]{0}', space=sflag, size = 0x8, scoped, tag = 'scoped memory for tpu_custom_call.1']
    #allocation4 [shape = 's32[2]{0}', space=sflag, size = 0x8, scoped, tag = 'scoped memory for tpu_custom_call.1']
    #allocation5 [shape = 'u8[16384]{0}', space=vmem, size = 0x4000, scoped, tag = 'input window, operand 1, single buffered']
    #allocation6 [shape = 's32[1]{0}', space=sflag, size = 0x4, scoped, tag = 'scoped memory for tpu_custom_call.1']
    #allocation7 [shape = 'u8[8192]{0}', space=vmem, size = 0x2000, scoped, tag = 'output window, operand 0']
    %10 = vsyncpa [#allocation3], 0
    %s11 = scalar_lea.sflag [#allocation3], 1
    %12 = vsyncpa %s11, 0
    %13 = vsyncpa [#allocation6], 0
    %14 = vsyncpa [#allocation4], 0
    %s15 = scalar_lea.sflag [#allocation4], 1
    %16 = vsyncpa %s15, 0
    loop: start=0, step=1, limit=4
    $region2: #{tpu_custom_call.1} parent=1 // loop_pre_header
      _
    $region3: #{tpu_custom_call.1} parent=1 // loop_header
      %s18 = sphi 0, %s22
      %p19 = scmp.ge.s32.totalorder %s18, 4
      %s28 = sphi 0, %s30
      %s31 = sphi 0, %s28
      %s32 = sphi 0, %s31
      %s48 = sphi 0, %s32
      %s52 = sphi 0, %s52
      %s54 = sphi 0, %s52
      %s55 = sphi 0, %s54
      %s69 = sphi 0, %s55
      %s73 = sphi 0, %s73
      %s75 = sphi 0, %s73
      %s76 = sphi 0, %s75
      %s90 = sphi 0, %s76
      %s94 = sphi 0, %s94
      %s96 = sphi 0, %s94
      %s97 = sphi 0, %s96
      %s111 = sphi 0, %s97
      %s115 = sphi 0, %s115
      %s117 = sphi 0, %s115
      %s118 = sphi 0, %s117
      %s132 = sphi 0, %s118
      %s138 = sphi 0, %s140
      %s141 = sphi 0, %s138
      %s142 = sphi 0, %s141
      %s158 = sphi 0, %s142
    $region4: #{tpu_custom_call.1} parent=1 // loop_header_branch
      %21 = sbr.rel (%p19) target = $region8
    $region5: #{tpu_custom_call.1} parent=1 // loop_body
      %s23 = ssub.s32 %s18, 1
      %s24 = ssub.s32 %s18, 2
      %s25 = sadd.s32 %s18, 1
      %s26 = ssub.s32 %s18, %s25
      %p27 = scmp.eq.s32.totalorder %s26, 0
      %s29 = sadd.s32 %s28, 1
      %s30 = scalar_select %p27, %s28, %s29
      %p33 = pneg %p27
      %p34 = scmp.eq.s32.totalorder %s18, 1
      %p35 = por %p33, %p34
      %p36 = scmp.ne.s32.totalorder %s28, %s31
      %p37 = scmp.eq.s32.totalorder %s18, 0
      %p38 = por %p36, %p37
      %p39 = scmp.ne.s32.totalorder %s28, %s31
      %p40 = scmp.eq.s32.totalorder %s23, 1
      %p41 = por %p39, %p40
      %p42 = scmp.ne.s32.totalorder %s31, %s32
      %p43 = scmp.eq.s32.totalorder %s23, 0
      %p44 = por %p42, %p43
      %p45 = scmp.ne.s32.totalorder %s31, %s32
      %p46 = scmp.eq.s32.totalorder %s24, 1
      %p47 = por %p45, %p46
      %p49 = scmp.ne.s32.totalorder %s32, %s48
      %p50 = scmp.eq.s32.totalorder %s24, 0
      %p51 = por %p49, %p50
      %s53 = sadd.s32 %s52, 1
      %p56 = scmp.eq.s32.totalorder %s18, 1
      %p57 = scmp.ne.s32.totalorder %s52, %s54
      %p58 = scmp.eq.s32.totalorder %s18, 0
      %p59 = por %p57, %p58
      %p60 = scmp.ne.s32.totalorder %s52, %s54
      %p61 = scmp.eq.s32.totalorder %s23, 1
      %p62 = por %p60, %p61
      %p63 = scmp.ne.s32.totalorder %s54, %s55
      %p64 = scmp.eq.s32.totalorder %s23, 0
      %p65 = por %p63, %p64
      %p66 = scmp.ne.s32.totalorder %s54, %s55
      %p67 = scmp.eq.s32.totalorder %s24, 1
      %p68 = por %p66, %p67
      %p70 = scmp.ne.s32.totalorder %s55, %s69
      %p71 = scmp.eq.s32.totalorder %s24, 0
      %p72 = por %p70, %p71
      %s74 = sadd.s32 %s73, 1
      %p77 = scmp.eq.s32.totalorder %s18, 1
      %p78 = scmp.ne.s32.totalorder %s73, %s75
      %p79 = scmp.eq.s32.totalorder %s18, 0
      %p80 = por %p78, %p79
      %p81 = scmp.ne.s32.totalorder %s73, %s75
      %p82 = scmp.eq.s32.totalorder %s23, 1
      %p83 = por %p81, %p82
      %p84 = scmp.ne.s32.totalorder %s75, %s76
      %p85 = scmp.eq.s32.totalorder %s23, 0
      %p86 = por %p84, %p85
      %p87 = scmp.ne.s32.totalorder %s75, %s76
      %p88 = scmp.eq.s32.totalorder %s24, 1
      %p89 = por %p87, %p88
      %p91 = scmp.ne.s32.totalorder %s76, %s90
      %p92 = scmp.eq.s32.totalorder %s24, 0
      %p93 = por %p91, %p92
      %s95 = sadd.s32 %s94, 1
      %p98 = scmp.eq.s32.totalorder %s18, 1
      %p99 = scmp.ne.s32.totalorder %s94, %s96
      %p100 = scmp.eq.s32.totalorder %s18, 0
      %p101 = por %p99, %p100
      %p102 = scmp.ne.s32.totalorder %s94, %s96
      %p103 = scmp.eq.s32.totalorder %s23, 1
      %p104 = por %p102, %p103
      %p105 = scmp.ne.s32.totalorder %s96, %s97
      %p106 = scmp.eq.s32.totalorder %s23, 0
      %p107 = por %p105, %p106
      %p108 = scmp.ne.s32.totalorder %s96, %s97
      %p109 = scmp.eq.s32.totalorder %s24, 1
      %p110 = por %p108, %p109
      %p112 = scmp.ne.s32.totalorder %s97, %s111
      %p113 = scmp.eq.s32.totalorder %s24, 0
      %p114 = por %p112, %p113
      %s116 = sadd.s32 %s115, 1
      %p119 = scmp.eq.s32.totalorder %s18, 1
      %p120 = scmp.ne.s32.totalorder %s115, %s117
      %p121 = scmp.eq.s32.totalorder %s18, 0
      %p122 = por %p120, %p121
      %p123 = scmp.ne.s32.totalorder %s115, %s117
      %p124 = scmp.eq.s32.totalorder %s23, 1
      %p125 = por %p123, %p124
      %p126 = scmp.ne.s32.totalorder %s117, %s118
      %p127 = scmp.eq.s32.totalorder %s23, 0
      %p128 = por %p126, %p127
      %p129 = scmp.ne.s32.totalorder %s117, %s118
      %p130 = scmp.eq.s32.totalorder %s24, 1
      %p131 = por %p129, %p130
      %p133 = scmp.ne.s32.totalorder %s118, %s132
      %p134 = scmp.eq.s32.totalorder %s24, 0
      %p135 = por %p133, %p134
      %s136 = ssub.s32 %s18, %s25
      %p137 = scmp.eq.s32.totalorder %s136, 0
      %s139 = sadd.s32 %s138, 1
      %s140 = scalar_select %p137, %s138, %s139
      %p143 = pneg %p137
      %p144 = scmp.eq.s32.totalorder %s18, 1
      %p145 = por %p143, %p144
      %p146 = scmp.ne.s32.totalorder %s138, %s141
      %p147 = scmp.eq.s32.totalorder %s18, 0
      %p148 = por %p146, %p147
      %p149 = scmp.ne.s32.totalorder %s138, %s141
      %p150 = scmp.eq.s32.totalorder %s23, 1
      %p151 = por %p149, %p150
      %p152 = scmp.ne.s32.totalorder %s141, %s142
      %p153 = scmp.eq.s32.totalorder %s23, 0
      %p154 = por %p152, %p153
      %p155 = scmp.ne.s32.totalorder %s141, %s142
      %p156 = scmp.eq.s32.totalorder %s24, 1
      %p157 = por %p155, %p156
      %p159 = scmp.ne.s32.totalorder %s142, %s158
      %p160 = scmp.eq.s32.totalorder %s24, 0
      %p161 = por %p159, %p160
      %p162 = scmp.le.s32.totalorder 1, %s18
      %p163 = scmp.lt.s32.totalorder %s18, 3
      %p164 = pnand %p162, %p163
      %p165 = pneg %p164
      // Predicated region
      $region9: #{tpu_custom_call.1} parent=5 // pred_check
        _
      $region10: #{tpu_custom_call.1} parent=5 // pred_check_branch
        %167 = sbr.rel (%p164) target = $region12
      $region11: #{tpu_custom_call.1} parent=5 // pred_region
        %s168 = ssub.s32 %s18, 1
        // Predicated region
        $region13: #{tpu_custom_call.1} parent=11 // pred_check
          %p169 = pneg %p65
        $region14: #{tpu_custom_call.1} parent=11 // pred_check_branch
          %171 = sbr.rel (%p169) target = $region16
        $region15: #{tpu_custom_call.1} parent=11 // pred_region
          %s173 = ssub.s32 512, 512
          %174 = vsyncadd [#allocation6], %s173
          %s175 = sshll.u32 [#allocation5], 4
          %s176 = int_to_ptr.vmem [resolvable:$true] %s175
          %181 = dma.hbm_to_vmem [thread:$0]  %s1, 512, %s176, [#allocation6], 128, 128, 8
        $region16: #{tpu_custom_call.1} parent=11 // pred_fallthru
          _
        // Predicated region
        $region17: #{tpu_custom_call.1} parent=11 // pred_check
          %p182 = pneg %p86
        $region18: #{tpu_custom_call.1} parent=11 // pred_check_branch
          %184 = sbr.rel (%p182) target = $region20
        $region19: #{tpu_custom_call.1} parent=11 // pred_region
          _
        $region20: #{tpu_custom_call.1} parent=11 // pred_fallthru
          _
        // Predicated region
        $region21: #{tpu_custom_call.1} parent=11 // pred_check
          %p185 = pneg %p107
        $region22: #{tpu_custom_call.1} parent=11 // pred_check_branch
          %187 = sbr.rel (%p185) target = $region24
        $region23: #{tpu_custom_call.1} parent=11 // pred_region
          _
        $region24: #{tpu_custom_call.1} parent=11 // pred_fallthru
          _
        // Predicated region
        $region25: #{tpu_custom_call.1} parent=11 // pred_check
          %p188 = pneg %p128
        $region26: #{tpu_custom_call.1} parent=11 // pred_check_branch
          %190 = sbr.rel (%p188) target = $region28
        $region27: #{tpu_custom_call.1} parent=11 // pred_region
          _
        $region28: #{tpu_custom_call.1} parent=11 // pred_fallthru
          _
      $region12: #{tpu_custom_call.1} parent=5 // pred_fallthru
        _
      %p191 = scmp.lt.s32.totalorder %s18, 2
      // Predicated region
      $region29: #{tpu_custom_call.1} parent=5 // pred_check
        %p192 = pneg %p191
      $region30: #{tpu_custom_call.1} parent=5 // pred_check_branch
        %194 = sbr.rel (%p192) target = $region32
      $region31: #{tpu_custom_call.1} parent=5 // pred_region
        // Predicated region
        $region33: #{tpu_custom_call.1} parent=31 // pred_check
          %p195 = pneg %p38
        $region34: #{tpu_custom_call.1} parent=31 // pred_check_branch
          %197 = sbr.rel (%p195) target = $region36
        $region35: #{tpu_custom_call.1} parent=31 // pred_region
          %s198 = sand.u32 %s28, 1
          %s199 = scalar_lea.sflag [#allocation3], %s198
          %s200 = sand.u32 %s28, 1
          %s201 = smul.addr %s200, 8
          %s202 = scalar_lea.vmem [#allocation2], %s201
          %s204 = ssub.s32 128, 128
          %205 = vsyncadd %s199, %s204
          %s206 = smul.addr %s18, 128
          %s207 = scalar_lea.hbm %s0, %s206
          %s209 = sshll.u32 %s202, 4
          %s210 = int_to_ptr.vmem [resolvable:$true] %s209
          %212 = dma.hbm_to_vmem [thread:$0]  %s207, 128, %s210, %s199
        $region36: #{tpu_custom_call.1} parent=31 // pred_fallthru
          _
      $region32: #{tpu_custom_call.1} parent=5 // pred_fallthru
        _
      %p213 = scmp.le.s32.totalorder 1, %s18
      %p214 = scmp.lt.s32.totalorder %s18, 3
      %p215 = pnand %p213, %p214
      %p216 = pneg %p215
      // Predicated region
      $region37: #{tpu_custom_call.1} parent=5 // pred_check
        _
      $region38: #{tpu_custom_call.1} parent=5 // pred_check_branch
        %218 = sbr.rel (%p215) target = $region40
      $region39: #{tpu_custom_call.1} parent=5 // pred_region
        %s219 = ssub.s32 %s18, 1
        %s220 = sand.u32 %s31, 1
        %s221 = scalar_lea.sflag [#allocation3], %s220
        %s222 = sand.u32 %s31, 1
        %s223 = smul.addr %s222, 8
        %s224 = scalar_lea.vmem [#allocation2], %s223
        // Predicated region
        $region41: #{tpu_custom_call.1} parent=39 // pred_check
          %p225 = pneg %p44
        $region42: #{tpu_custom_call.1} parent=39 // pred_check_branch
          %227 = sbr.rel (%p225) target = $region44
        $region43: #{tpu_custom_call.1} parent=39 // pred_region
          %228 = dma.done %s221, 128
        $region44: #{tpu_custom_call.1} parent=39 // pred_fallthru
          _
        // Predicated region
        $region45: #{tpu_custom_call.1} parent=39 // pred_check
          %p229 = pneg %p65
        $region46: #{tpu_custom_call.1} parent=39 // pred_check_branch
          %231 = sbr.rel (%p229) target = $region48
        $region47: #{tpu_custom_call.1} parent=39 // pred_region
          %232 = dma.done [#allocation6], 512
        $region48: #{tpu_custom_call.1} parent=39 // pred_fallthru
          _
        %s233 = sand.u32 %s31, 1
        %s234 = scalar_lea.sflag [#allocation3], %s233
        %s235 = sand.u32 %s31, 1
        %s236 = smul.addr %s235, 8
        %s237 = scalar_lea.vmem [#allocation2], %s236
        %p238 = pneg %p44
        %p239 = pneg %p41
        %p240 = pneg %p65
        %p241 = pneg %p62
        %p242 = pneg %p86
        %p243 = pneg %p83
        %p244 = pneg %p107
        %p245 = pneg %p104
        %p246 = pneg %p128
        %p247 = pneg %p125
        %p248 = pneg %p154
        %p249 = pneg %p151
        %s250 = sand.u32 %s141, 1
        %s251 = scalar_lea.sflag [#allocation4], %s250
        %s252 = sand.u32 %s141, 1
        %s253 = smul.addr %s252, 8
        %s254 = scalar_lea.vmem [#allocation7], %s253
        %v255 = vld [vmem:[%s224] sm:$0xff]
        %v256 = vld [vmem:[#allocation5] sm:$0xff]
        %v257 = vld [vmem:[#allocation5 + $0x8] sm:$0xff]
        %v258 = vld [vmem:[#allocation5 + $0x10] sm:$0xff]
        %v259 = vld [vmem:[#allocation5 + $0x18] sm:$0xff]
        %v260 = vld [vmem:[%s2] sm:$0x1]
        %v262 = vlaneseq
        %v263 = vshrl.u32 %v262, 7
        %v264 = vsub.s32 0, %v263
        %v265 = vrot.slane %v260, %v264
        %vm267 = vcmask 261120
        %v269 = vsel %vm267, %v255, 0
        %271 = vmatprep.subr.mxu0 0.0
        %272 = vmatpush1.msra.mxu0 %v256
        %273 = vmatprep.subr.mxu0 0.0
        %274 = vmatpush1.msra.mxu0 %v257
        %275 = vmatprep.subr.mxu0 0.0
        %276 = vmatpush1.msra.mxu0 %v258
        %277 = vmatprep.subr.mxu0 0.0
        %278 = vmatpush1.msra.mxu0 %v259
        %279 = vmatprep.subr.mxu0 0.0
        %280 = vmatpush1.msra.mxu0 0.0
        %281 = vmatprep.subr.mxu0 0.0
        %282 = vmatpush1.msra.mxu0 0.0
        %283 = vmatprep.subr.mxu0 0.0
        %284 = vmatpush1.msra.mxu0 0.0
        %285 = vmatprep.subr.mxu0 0.0
        %286 = vmatpush1.msra.mxu0 0.0
        %287 = vmatprep.subr.mxu0 0.0
        %288 = vmatpush1.msra.mxu0 0.0
        %289 = vmatprep.subr.mxu0 0.0
        %290 = vmatpush1.msra.mxu0 0.0
        %291 = vmatprep.subr.mxu0 0.0
        %292 = vmatpush1.msra.mxu0 0.0
        %293 = vmatprep.subr.mxu0 0.0
        %294 = vmatpush1.msra.mxu0 0.0
        %295 = vmatprep.subr.mxu0 0.0
        %296 = vmatpush1.msra.mxu0 0.0
        %297 = vmatprep.subr.mxu0 0.0
        %298 = vmatpush1.msra.mxu0 0.0
        %299 = vmatprep.subr.mxu0 0.0
        %300 = vmatpush1.msra.mxu0 0.0
        %301 = vmatprep.subr.mxu0 0.0
        %302 = vmatpush1.msra.mxu0 0.0
        %303 = vmatprep.subr.mxu0 0.0
        %304 = vmatpush1.msra.mxu0 0.0
        %305 = vmatprep.subr.mxu0 0.0
        %306 = vmatpush1.msra.mxu0 0.0
        %307 = vmatprep.subr.mxu0 0.0
        %308 = vmatpush1.msra.mxu0 0.0
        %309 = vmatprep.subr.mxu0 0.0
        %310 = vmatpush1.msra.mxu0 0.0
        %311 = vmatprep.subr.mxu0 0.0
        %312 = vmatpush1.msra.mxu0 0.0
        %313 = vmatprep.subr.mxu0 0.0
        %314 = vmatpush1.msra.mxu0 0.0
        %315 = vmatprep.subr.mxu0 0.0
        %316 = vmatpush1.msra.mxu0 0.0
        %317 = vmatprep.subr.mxu0 0.0
        %318 = vmatpush1.msra.mxu0 0.0
        %319 = vmatprep.subr.mxu0 0.0
        %320 = vmatpush1.msra.mxu0 0.0
        %321 = vmatprep.subr.mxu0 0.0
        %322 = vmatpush1.msra.mxu0 0.0
        %323 = vmatprep.subr.mxu0 0.0
        %324 = vmatpush1.msra.mxu0 0.0
        %325 = vmatprep.subr.mxu0 0.0
        %326 = vmatpush1.msra.mxu0 0.0
        %327 = vmatprep.subr.mxu0 0.0
        %328 = vmatpush1.msra.mxu0 0.0
        %329 = vmatprep.subr.mxu0 0.0
        %330 = vmatpush1.msra.mxu0 0.0
        %331 = vmatprep.subr.mxu0 0.0
        %332 = vmatpush1.msra.mxu0 0.0
        %333 = vmatprep.subr.mxu0 0.0
        %334 = vmatpush1.msra.mxu0 0.0
        %335 = vmatprep.mubr.f32.mxu0 0.0
        %336 = vmatmul.mubr.f32.gmra.mrb[0].mxu0 %v269
        %v337 = vpop.f32.mrb[0].mxu0
        %v338 = vadd.f32 %v265, %v337
        %v339 = vpop.f32.mrb[0].mxu0
        %340 = vdwg.mxu0
        %v341 = vld [vmem:[%s3] sm:$0x1]
        %v342 = vld [vmem:[%s4] sm:$0x1]
        %v343 = vsel %vm267, %v338, 0.0
        %344 = vadd.xlane.f32.xlu0 %v343
        %v345 = vpop.xlane.xlu0 %344
        %v346 = vrcp.pop 32.0
        %v347 = vmul.f32 %v345, %v346
        %v348 = vsub.f32 %v338, %v347
        %v349 = vmul.f32 %v348, %v348
        %v350 = vsel %vm267, %v349, 0.0
        %351 = vadd.xlane.f32.xlu0 %v350
        %v352 = vpop.xlane.xlu0 %351
        %v353 = vmul.f32 %v352, 0.032258064
        %v354 = vrsqrt.pop %v353
        %v355 = vmul.f32 %v353, %v354
        %vm356 = vcmp.eq.f32.partialorder %v353, inf
        %v357 = vsel %vm356, %v353, %v355
        %vm358 = vcmp.eq.f32.partialorder %v353, 0.0
        %v359 = vand.u32 %v353, 2147483648
        %v360 = vsel %vm358, %v359, %v357
        %v361 = vadd.f32 %v360, 1e-06
        %v362 = vrcp.pop %v361
        %v363 = vmul.f32 %v348, %v362
        %v365 = vlaneseq
        %v366 = vshrl.u32 %v365, 7
        %v367 = vsub.s32 0, %v366
        %v368 = vrot.slane %v341, %v367
        %v370 = vmul.f32 %v368, %v363
        %v372 = vlaneseq
        %v373 = vshrl.u32 %v372, 7
        %v374 = vsub.s32 0, %v373
        %v375 = vrot.slane %v342, %v374
        %v377 = vadd.f32 %v370, %v375
        %v378 = vmax.f32 %v377, 0.0
        %379 = vst.msk [vmem:[%s254] sm:$0xff] %vm267, %v378
        %s380 = sand.u32 %s141, 1
        %s381 = scalar_lea.sflag [#allocation4], %s380
        %s382 = sand.u32 %s141, 1
        %s383 = smul.addr %s382, 8
        %s384 = scalar_lea.vmem [#allocation7], %s383
        // Predicated region
        $region49: #{tpu_custom_call.1} parent=39 // pred_check
          %p385 = pneg %p151
        $region50: #{tpu_custom_call.1} parent=39 // pred_check_branch
          %387 = sbr.rel (%p385) target = $region52
        $region51: #{tpu_custom_call.1} parent=39 // pred_region
          %s389 = ssub.s32 128, 128
          %390 = vsyncadd %s381, %s389
          %s391 = smul.addr %s23, 128
          %s392 = scalar_lea.hbm %s5, %s391
          %s394 = sshll.u32 %s384, 4
          %s395 = int_to_ptr.vmem [resolvable:$true] %s394
          %397 = dma.vmem_to_hbm [thread:$0]  %s395, 128, %s392, %s381
        $region52: #{tpu_custom_call.1} parent=39 // pred_fallthru
          _
      $region40: #{tpu_custom_call.1} parent=5 // pred_fallthru
        _
      %p398 = scmp.le.s32.totalorder 2, %s18
      // Predicated region
      $region53: #{tpu_custom_call.1} parent=5 // pred_check
        %p399 = pneg %p398
      $region54: #{tpu_custom_call.1} parent=5 // pred_check_branch
        %401 = sbr.rel (%p399) target = $region56
      $region55: #{tpu_custom_call.1} parent=5 // pred_region
        %s402 = ssub.s32 %s18, 2
        // Predicated region
        $region57: #{tpu_custom_call.1} parent=55 // pred_check
          %p403 = pneg %p157
        $region58: #{tpu_custom_call.1} parent=55 // pred_check_branch
          %405 = sbr.rel (%p403) target = $region60
        $region59: #{tpu_custom_call.1} parent=55 // pred_region
          %s406 = sand.u32 %s142, 1
          %s407 = scalar_lea.sflag [#allocation4], %s406
          %s408 = sand.u32 %s142, 1
          %s409 = smul.addr %s408, 8
          %s410 = scalar_lea.vmem [#allocation7], %s409
          %411 = dma.done %s407, 128
        $region60: #{tpu_custom_call.1} parent=55 // pred_fallthru
          _
      $region56: #{tpu_custom_call.1} parent=5 // pred_fallthru
        _
    $region6: #{tpu_custom_call.1} parent=1 // loop_footer
      %s22 = sadd.s32 1, %s18
    $region7: #{tpu_custom_call.1} parent=1 // loop_footer_branch
      %17 = sbr.rel target = $region3
    $region8: #{tpu_custom_call.1} parent=1 // loop_exit
      _
    %412 = vsyncpa [#allocation3], 1
    %s413 = scalar_lea.sflag [#allocation3], 1
    %414 = vsyncpa %s413, 1
    %415 = vsyncpa [#allocation6], 1
    %416 = vsyncpa [#allocation4], 1
    %s417 = scalar_lea.sflag [#allocation4], 1
    %418 = vsyncpa %s417, 1

</llo_original>
